<compile_context>
chip_gen: v7x
topology: tpu7x:2x2x1
jax: 0.10.0
libtpu: 0.0.40
codegen_flags: <defaults>
</compile_context>

<pallas_src>
import re

import jax
import jax.numpy as jnp
from jax.experimental import pallas as pl
from jax.experimental.pallas import tpu as pltpu

# ITU-R 601-2 luma coefficients (torchvision.transforms.functional.rgb_to_grayscale)
_R_W = 0.2989
_G_W = 0.587
_B_W = 0.114


def _tpu_generation() -> int:
    """Best-effort TPU generation (5, 6, 7, ...) from the device kind string."""
    try:
        kind = jax.devices()[0].device_kind
    except Exception:
        return 0
    m = re.search(r"(\d+)", kind)
    return int(m.group(1)) if m else 0


def _round_up(x: int, m: int) -> int:
    return ((x + m - 1) // m) * m


def _make_grayscale_kernel(compute_dtype):
    def kernel(img_ref, out_ref):
        # img_ref: (3, TR, L) VMEM tile (channels 0..2 of the input)
        # out_ref: (1, TR, L) VMEM tile
        r = img_ref[0, :, :].astype(compute_dtype)
        g = img_ref[1, :, :].astype(compute_dtype)
        b = img_ref[2, :, :].astype(compute_dtype)
        # Python-float coefficients keep the weak-typed compute in compute_dtype.
        gray = _R_W * r + _G_W * g + _B_W * b
        # Plain (truncating for ints) cast == torchvision's `.to(img.dtype)`.
        # No round/clip: weighted average of in-range values stays in range.
        out_ref[0, :, :] = gray.astype(out_ref.dtype)

    return kernel


def _lane_dense_layout(h: int, w: int) -> tuple[int, int]:
    """Factor the contiguous per-channel (H, W) plane into (R, L) with L a
    multiple of 128 when possible, so output stores are unmasked lane-dense."""
    if w >= 128 and w % 128 == 0:
        return h, w
    n = h * w
    if n % 128 != 0:
        return h, w  # can't relayout for free; accept masked partial stores
    m = n // 128
    # Largest L = 128*k (capped at 4096 lanes) dividing N with enough rows to tile.
    for k in range(min(m, 32), 0, -1):
        if m % k == 0 and (n // (128 * k)) >= 8:
            return n // (128 * k), 128 * k
    return n // 128, 128


def _pick_tile_rows(r: int, l: int, itemsize: int, budget_bytes: int) -> int:
    """Row-tile over the R axis: keep the double-buffered (3 in + 1 out) working
    set under the scoped-VMEM budget, stay sublane-aligned, and keep the grid at
    >= 4 steps (>= 2 for short images) so both v7x TCs get work and the pipeline
    overlaps DMA with compute."""
    align = 32 if itemsize == 1 else (16 if itemsize == 2 else 8)
    # double-buffered: 2 * (3 input rows + 1 output row) * L * itemsize
    tr = budget_bytes // (2 * 4 * max(l, 1) * itemsize)
    if r >= 4 * align:
        tr = min(tr, _round_up(pl.cdiv(r, 4), align))  # aim for ~4 grid steps
    elif r >= 2 * align:
        tr = min(tr, _round_up(pl.cdiv(r, 2), align))  # at least 2 steps
    if tr >= r:
        return r  # full extent is always legal
    if tr < align:
        return min(r, align)  # extremely wide rows: one aligned row-group
    return (tr // align) * align


def enforce_grayscale(img: jax.Array, tile_rows: int | None = None) -> jax.Array:
    """JAX/Pallas equivalent of EnforceGrayscale.forward.

    img: (C, H, W). Uses the first 3 channels; if C > 1, converts to grayscale
    with output shape (1, H, W); if C == 1, returns the image unchanged.
    """
    c, h, w = img.shape
    if c <= 1:
        return img  # single-channel passthrough (img[:3] is identity here)
    if c == 2:
        # torchvision's rgb_to_grayscale would also fail when unbinding r, g, b.
        raise ValueError(f"rgb_to_grayscale needs >= 3 channels, got {c}")

    dtype = img.dtype
    itemsize = jnp.dtype(dtype).itemsize
    gen = _tpu_generation()

    if dtype == jnp.bfloat16:
        # bf16-native VPU math only exists on v6e/v7x; widen on older chips.
        compute_dtype = jnp.bfloat16 if gen >= 6 else jnp.float32
    elif jnp.issubdtype(dtype, jnp.floating):
        compute_dtype = dtype
    else:
        compute_dtype = jnp.float32

    # Scoped-VMEM budget: ~24 MiB on v6e/v7x (32 MiB default), 12 MiB on v5-class.
    budget_bytes = (24 if gen >= 6 else 12) * 1024 * 1024

    # Lane-dense relayout of the per-channel plane when W isn't 128-aligned.
    r_dim, l_dim = _lane_dense_layout(h, w)
    x = img if (r_dim, l_dim) == (h, w) else img.reshape(c, r_dim, l_dim)

    tr = tile_rows if tile_rows is not None else _pick_tile_rows(
        r_dim, l_dim, itemsize, budget_bytes)
    grid = (pl.cdiv(r_dim, tr),)

    out = pl.pallas_call(
        _make_grayscale_kernel(compute_dtype),
        out_shape=jax.ShapeDtypeStruct((1, r_dim, l_dim), dtype),
        grid=grid,
        # Full (C, R, L) array in; channel block of size 3 at block index 0
        # selects channels 0..2 without materializing an HBM slice copy.
        in_specs=[pl.BlockSpec((3, tr, l_dim), lambda i: (0, i, 0))],
        out_specs=pl.BlockSpec((1, tr, l_dim), lambda i: (0, i, 0)),
        compiler_params=pltpu.CompilerParams(
            dimension_semantics=("parallel",),  # shard R tiles across v7x's 2 TCs
        ),
        cost_estimate=pl.CostEstimate(
            flops=5 * h * w,                    # 3 mul + 2 add per pixel
            transcendentals=0,
            bytes_accessed=4 * h * w * itemsize,  # 3 channels in + 1 out
        ),
    )(x)
    return out if (r_dim, l_dim) == (h, w) else out.reshape(1, h, w)


def _reference(img: jnp.ndarray) -> jnp.ndarray:
    img3 = img[:3, :, :].astype(jnp.float32)
    if img3.shape[0] <= 1:
        return img3
    r, g, b = img3[0], img3[1], img3[2]
    return (_R_W * r + _G_W * g + _B_W * b)[None, :, :]


if __name__ == "__main__":
    key = jax.random.PRNGKey(0)
    k1, k2, k3, k4, k5 = jax.random.split(key, 5)

    # RGBA input: exercises in-kernel channel-0..2 selection + lane-dense
    # relayout (16x16 plane -> 2x128 slab so stores are unmasked).
    x_rgba = jax.random.uniform(k1, (4, 16, 16), dtype=jnp.float32)
    y = enforce_grayscale(x_rgba)
    jax.block_until_ready(y)
    assert y.shape == (1, 16, 16), y.shape
    assert jnp.allclose(y, _reference(x_rgba).astype(y.dtype), atol=1e-6, rtol=1e-6)

    # RGB input, W already 128-aligned: tile picker gives a 4-step grid
    # (exercises the software-pipelined / TC-sharded path).
    x_rgb = jax.random.uniform(k2, (3, 32, 128), dtype=jnp.float32)
    y2 = enforce_grayscale(x_rgb)
    jax.block_until_ready(y2)
    assert y2.shape == (1, 32, 128), y2.shape
    assert jnp.allclose(y2, _reference(x_rgb).astype(y2.dtype), atol=1e-6, rtol=1e-6)

    # bf16 input: bf16-native compute on v6e/v7x, f32 on older chips.
    x_bf16 = jax.random.uniform(k3, (3, 16, 128), dtype=jnp.float32).astype(jnp.bfloat16)
    y3 = enforce_grayscale(x_bf16)
    jax.block_until_ready(y3)
    assert y3.dtype == jnp.bfloat16 and y3.shape == (1, 16, 128)
    assert jnp.allclose(y3.astype(jnp.float32), _reference(x_bf16), atol=2e-2, rtol=2e-2)

    # uint8 input: truncating cast (torchvision parity), no round/clip.
    x_u8 = jax.random.randint(k4, (3, 16, 32), 0, 256, dtype=jnp.int32).astype(jnp.uint8)
    y4 = enforce_grayscale(x_u8)
    jax.block_until_ready(y4)
    assert y4.dtype == jnp.uint8 and y4.shape == (1, 16, 32)
    ref_u8 = _reference(x_u8).astype(jnp.uint8)  # truncating cast, same as kernel
    diff = jnp.abs(y4.astype(jnp.int32) - ref_u8.astype(jnp.int32))
    assert int(diff.max()) <= 1, int(diff.max())

    # Single-channel passthrough.
    x1 = jax.random.uniform(k5, (1, 16, 16), dtype=jnp.float32)
    y1 = enforce_grayscale(x1)
    jax.block_until_ready(y1)
    assert jnp.array_equal(y1, x1)

    print("KERNEL_OK")
</pallas_src>

<mosaic_0001>
module attributes {stable_mosaic.version = 11 : i64} {
  func.func @kernel(%arg0: i32, %arg1: memref<3x2x128xf32, #tpu.memory_space<vmem>>, %arg2: memref<1x2x128xf32, #tpu.memory_space<vmem>>) attributes {dimension_semantics = [#tpu.dimension_semantics<parallel>], iteration_bounds = array<i64: 1>, scalar_prefetch = 0 : i64, scratch_operands = 0 : i64, tpu.core_type = #tpu.core_type<tc>, window_params = [{transform_indices = @transform_0, window_bounds = array<i64: 3, 2, 128>}, {transform_indices = @transform_1, window_bounds = array<i64: 1, 2, 128>}]} {
    %c0 = arith.constant 0 : index
    %c0_0 = arith.constant 0 : index
    %c0_1 = arith.constant 0 : index
    %0 = vector.load %arg1[%c0, %c0_0, %c0_1] : memref<3x2x128xf32, #tpu.memory_space<vmem>>, vector<1x2x128xf32>
    %1 = vector.shape_cast %0 : vector<1x2x128xf32> to vector<2x128xf32>
    %c1 = arith.constant 1 : index
    %c0_2 = arith.constant 0 : index
    %c0_3 = arith.constant 0 : index
    %2 = vector.load %arg1[%c1, %c0_2, %c0_3] : memref<3x2x128xf32, #tpu.memory_space<vmem>>, vector<1x2x128xf32>
    %3 = vector.shape_cast %2 : vector<1x2x128xf32> to vector<2x128xf32>
    %c2 = arith.constant 2 : index
    %c0_4 = arith.constant 0 : index
    %c0_5 = arith.constant 0 : index
    %4 = vector.load %arg1[%c2, %c0_4, %c0_5] : memref<3x2x128xf32, #tpu.memory_space<vmem>>, vector<1x2x128xf32>
    %5 = vector.shape_cast %4 : vector<1x2x128xf32> to vector<2x128xf32>
    %cst = arith.constant 2.989000e-01 : f32
    %6 = vector.broadcast %cst : f32 to vector<2x128xf32>
    %7 = arith.mulf %6, %1 : vector<2x128xf32>
    %cst_6 = arith.constant 5.870000e-01 : f32
    %8 = vector.broadcast %cst_6 : f32 to vector<2x128xf32>
    %9 = arith.mulf %8, %3 : vector<2x128xf32>
    %10 = arith.addf %7, %9 : vector<2x128xf32>
    %cst_7 = arith.constant 1.140000e-01 : f32
    %11 = vector.broadcast %cst_7 : f32 to vector<2x128xf32>
    %12 = arith.mulf %11, %5 : vector<2x128xf32>
    %13 = arith.addf %10, %12 : vector<2x128xf32>
    %c0_8 = arith.constant 0 : index
    %c0_9 = arith.constant 0 : index
    %c0_10 = arith.constant 0 : index
    %14 = vector.load %arg2[%c0_8, %c0_9, %c0_10] : memref<1x2x128xf32, #tpu.memory_space<vmem>>, vector<1x2x128xf32>
    %15 = vector.shape_cast %14 : vector<1x2x128xf32> to vector<2x128xf32>
    %16 = vector.shape_cast %13 : vector<2x128xf32> to vector<1x2x128xf32>
    tpu.vector_store %arg2[%c0_8, %c0_9, %c0_10], %16 {strides = array<i32>} : memref<1x2x128xf32, #tpu.memory_space<vmem>>, vector<1x2x128xf32>,
    return
  }
  func.func @transform_0(%arg0: i32) -> (i32, i32, i32) {
    %c0_i32 = arith.constant 0 : i32
    %c0_i32_0 = arith.constant 0 : i32
    %c0_i32_1 = arith.constant 0 : i32
    return %c0_i32, %arg0, %c0_i32_0 : i32, i32, i32
  }
  func.func @transform_1(%arg0: i32) -> (i32, i32, i32) {
    %c0_i32 = arith.constant 0 : i32
    %c0_i32_0 = arith.constant 0 : i32
    %c0_i32_1 = arith.constant 0 : i32
    return %c0_i32, %arg0, %c0_i32_0 : i32, i32, i32
  }
}

</mosaic_0001>

<llo_original>
// kernel: tpu_custom_call.1
$region0: #{tpu_custom_call.1}
  #allocation0 [shape = 'u32[]', space=smem, size = 0x4, offset = 0x4, fixed_abs, tag = 'smem constant byte address 0x4 - core index']
  #allocation1 [shape = 'u32[144,128]{1,0:T(1,128)}', space=vmem, size = 0x12000, scoped, tag = 'internal scratch']
  %s0 = inlined_call_operand.hbm [shape: f32[4,2,128], index: 0, kind: input, shape index: {}]
  %s1 = inlined_call_operand.hbm [shape: f32[1,2,128], index: 1, kind: output, shape index: {}]
  %s2 = sld [smem:[#allocation0]]
  $region18: #{tpu_custom_call.1} parent=0
    _
  %s4 = ssub.s32 1, %s2
  %s5 = scalar_select 0, %s4, %s2
  $region1: #{tpu_custom_call.1} parent=0
    #allocation2 [shape = 'u8[3072]{0}', space=vmem, size = 0xc00, scoped, tag = 'input window, operand 0, single buffered']
    #allocation3 [shape = 's32[1]{0}', space=sflag, size = 0x4, scoped, tag = 'scoped memory for tpu_custom_call.1']
    #allocation4 [shape = 's32[1]{0}', space=sflag, size = 0x4, scoped, tag = 'scoped memory for tpu_custom_call.1']
    #allocation5 [shape = 'u8[1024]{0}', space=vmem, size = 0x400, scoped, tag = 'output window, operand 0, single buffered']
    %6 = vsyncpa [#allocation3], 0
    %7 = vsyncpa [#allocation4], 0
    // Predicated region
    $region2: #{tpu_custom_call.1} parent=1 // pred_check
      _
    $region3: #{tpu_custom_call.1} parent=1 // pred_check_branch
      %9 = sbr.rel (0) target = $region5
    $region4: #{tpu_custom_call.1} parent=1 // pred_region
      %s11 = ssub.s32 96, 96
      %12 = vsyncadd [#allocation3], %s11
      %s13 = sshll.u32 [#allocation2], 4
      %s14 = int_to_ptr.vmem [resolvable:$true] %s13
      %19 = dma.hbm_to_vmem [thread:$0]  %s0, 96, %s14, [#allocation3], 32, 32, 2
    $region5: #{tpu_custom_call.1} parent=1 // pred_fallthru
      _
    // Predicated region
    $region6: #{tpu_custom_call.1} parent=1 // pred_check
      _
    $region7: #{tpu_custom_call.1} parent=1 // pred_check_branch
      %21 = sbr.rel (0) target = $region9
    $region8: #{tpu_custom_call.1} parent=1 // pred_region
      %22 = dma.done [#allocation3], 96
    $region9: #{tpu_custom_call.1} parent=1 // pred_fallthru
      _
    %v23 = vld [vmem:[#allocation2] sm:$0x3]
    %s24 = scalar_lea.vmem [#allocation2], 2
    %v25 = vld [vmem:[%s24] sm:$0x3]
    %s26 = scalar_lea.vmem [#allocation2], 4
    %v27 = vld [vmem:[%s26] sm:$0x3]
    %v28 = vmul.f32 %v23, 0.2989
    %v29 = vmul.f32 %v25, 0.587
    %v30 = vadd.f32 %v28, %v29
    %v31 = vmul.f32 %v27, 0.114
    %v32 = vadd.f32 %v30, %v31
    %33 = vst [vmem:[#allocation5] sm:$0x3] %v32
    // Predicated region
    $region10: #{tpu_custom_call.1} parent=1 // pred_check
      _
    $region11: #{tpu_custom_call.1} parent=1 // pred_check_branch
      %35 = sbr.rel (0) target = $region13
    $region12: #{tpu_custom_call.1} parent=1 // pred_region
      %s37 = ssub.s32 32, 32
      %38 = vsyncadd [#allocation4], %s37
      %s40 = sshll.u32 [#allocation5], 4
      %s41 = int_to_ptr.vmem [resolvable:$true] %s40
      %43 = dma.vmem_to_hbm [thread:$0]  %s41, 32, %s1, [#allocation4]
    $region13: #{tpu_custom_call.1} parent=1 // pred_fallthru
      _
    // Predicated region
    $region14: #{tpu_custom_call.1} parent=1 // pred_check
      _
    $region15: #{tpu_custom_call.1} parent=1 // pred_check_branch
      %45 = sbr.rel (0) target = $region17
    $region16: #{tpu_custom_call.1} parent=1 // pred_region
      %46 = dma.done [#allocation4], 32
    $region17: #{tpu_custom_call.1} parent=1 // pred_fallthru
      _
    %47 = vsyncpa [#allocation3], 1
    %48 = vsyncpa [#allocation4], 1

</llo_original>
